<compile_context>
chip_gen: v6e
topology: v6e:2x2x1
jax: 0.10.0
libtpu: 0.0.40
codegen_flags: <defaults>
</compile_context>

<pallas_src>
import functools

import jax
import jax.numpy as jnp
from jax.experimental import pallas as pl
from jax.experimental.pallas import tpu as pltpu

_LANES = 128
_SUBLANES = 8
_MAX_TILE_ROWS = 512  # 512 * 128 * 4 B = 256 KiB per (double-buffered) block


def _round_up(n, m):
    return ((n + m - 1) // m) * m


def _lcf_kernel(params_ref, eps_ref, out_ref):
    """params_ref: SMEM (2,) = [mean, std]; eps_ref/out_ref: VMEM (tile_rows, 128)."""
    mean = params_ref[0]
    std = params_ref[1]
    out_ref[...] = mean + std * eps_ref[...]


@functools.partial(jax.jit, static_argnames=("batch_size",))
def _lcf_sample(mean, log_std, key, *, batch_size):
    """Reparameterized sample of shape (batch_size, 1)."""
    rows = pl.cdiv(batch_size, _LANES)
    tile_rows = min(_MAX_TILE_ROWS, _round_up(rows, _SUBLANES))
    rows_padded = _round_up(rows, tile_rows)
    grid = (rows_padded // tile_rows,)

    # Lane-packed standard-normal noise: sample r*128 + l lives at [r, l].
    eps = jax.random.normal(key, (rows_padded, _LANES), dtype=jnp.float32)

    # Precompute std = exp(log_std) on the host/XLA side; pack [mean, std].
    params = jnp.stack(
        [
            jnp.asarray(mean, dtype=jnp.float32).reshape(()),
            jnp.exp(jnp.asarray(log_std, dtype=jnp.float32)).reshape(()),
        ]
    )

    out = pl.pallas_call(
        _lcf_kernel,
        out_shape=jax.ShapeDtypeStruct((rows_padded, _LANES), jnp.float32),
        grid=grid,
        in_specs=[
            pl.BlockSpec(memory_space=pltpu.MemorySpace.SMEM),  # [mean, std]
            pl.BlockSpec((tile_rows, _LANES), lambda i: (i, 0)),  # eps tile
        ],
        out_specs=pl.BlockSpec((tile_rows, _LANES), lambda i: (i, 0)),
        compiler_params=pltpu.CompilerParams(
            dimension_semantics=("parallel",)
        ),
    )(params, eps)

    # Cheap: reads only the first batch_size samples of the lane-packed slab.
    return out.reshape(-1)[:batch_size, None]


def lcf_forward(x, batch_size, mean, log_std, key):
    """Equivalent of lcfNetwork.forward(x, batch_size).

    `x` is accepted (and ignored) to mirror the PyTorch signature; it stays
    outside the jitted function so it is never staged/transferred.
    Returns float32 array of shape (batch_size, 1).
    """
    del x  # unused by the reference forward pass
    return _lcf_sample(mean, log_std, key, batch_size=batch_size)


if __name__ == "__main__":
    key = jax.random.PRNGKey(0)
    x_key, sample_key = jax.random.split(key)

    # Deterministic parameters, exactly as in lcfNetwork.__init__
    mean = jnp.array([0.0], dtype=jnp.float32)
    log_std = jnp.array([-2.3], dtype=jnp.float32)

    # Small example inputs consistent with the forward signature.
    batch_size = 8
    x = jax.random.normal(x_key, (2, 4), dtype=jnp.float32)  # unused, mirrors torch API

    lcf = lcf_forward(x, batch_size, mean, log_std, sample_key)
    lcf = jax.block_until_ready(lcf)

    assert lcf.shape == (batch_size, 1), lcf.shape
    assert lcf.dtype == jnp.float32
    # Samples from N(0, exp(-2.3) ~= 0.1) should be finite and small in magnitude.
    assert bool(jnp.all(jnp.isfinite(lcf)))
    assert bool(jnp.all(jnp.abs(lcf) < 1.0))

    print("KERNEL_OK")
</pallas_src>

<mosaic_0001>
module attributes {stable_mosaic.version = 11 : i64} {
  func.func @_lcf_kernel(%arg0: i32, %arg1: memref<2xf32, #tpu.memory_space<smem>>, %arg2: memref<8x128xf32, #tpu.memory_space<vmem>>, %arg3: memref<8x128xf32, #tpu.memory_space<vmem>>) attributes {dimension_semantics = [#tpu.dimension_semantics<parallel>], iteration_bounds = array<i64: 1>, scalar_prefetch = 0 : i64, scratch_operands = 0 : i64, tpu.core_type = #tpu.core_type<tc>, window_params = [{transform_indices = @transform_0, window_bounds = array<i64: 2>}, {transform_indices = @transform_1, window_bounds = array<i64: 8, 128>}, {transform_indices = @transform_2, window_bounds = array<i64: 8, 128>}]} {
    %c0 = arith.constant 0 : index
    %0 = memref.load %arg1[%c0] : memref<2xf32, #tpu.memory_space<smem>>
    %c1 = arith.constant 1 : index
    %1 = memref.load %arg1[%c1] : memref<2xf32, #tpu.memory_space<smem>>
    %c0_0 = arith.constant 0 : index
    %c0_1 = arith.constant 0 : index
    %2 = vector.load %arg2[%c0_0, %c0_1] : memref<8x128xf32, #tpu.memory_space<vmem>>, vector<8x128xf32>
    %3 = vector.broadcast %1 : f32 to vector<8x128xf32>
    %4 = arith.mulf %3, %2 : vector<8x128xf32>
    %5 = vector.broadcast %0 : f32 to vector<8x128xf32>
    %6 = arith.addf %5, %4 : vector<8x128xf32>
    %c0_2 = arith.constant 0 : index
    %c0_3 = arith.constant 0 : index
    %7 = vector.load %arg3[%c0_2, %c0_3] : memref<8x128xf32, #tpu.memory_space<vmem>>, vector<8x128xf32>
    tpu.vector_store %arg3[%c0_2, %c0_3], %6 {strides = array<i32>} : memref<8x128xf32, #tpu.memory_space<vmem>>, vector<8x128xf32>,
    return
  }
  func.func @transform_0(%arg0: i32) -> i32 {
    %c0_i32 = arith.constant 0 : i32
    %c0_i32_0 = arith.constant 0 : i32
    return %c0_i32 : i32
  }
  func.func @transform_1(%arg0: i32) -> (i32, i32) {
    %c0_i32 = arith.constant 0 : i32
    %c0_i32_0 = arith.constant 0 : i32
    return %arg0, %c0_i32 : i32, i32
  }
  func.func @transform_2(%arg0: i32) -> (i32, i32) {
    %c0_i32 = arith.constant 0 : i32
    %c0_i32_0 = arith.constant 0 : i32
    return %arg0, %c0_i32 : i32, i32
  }
}

</mosaic_0001>

<llo_original>
// kernel: _lcf_sample.1
$region0: #{_lcf_sample.1}
  #allocation0 [shape = 'u32[]', space=smem, size = 0x4, offset = 0x4, fixed_abs, tag = 'smem constant byte address 0x4 - core index']
  #allocation1 [shape = 'u32[144,128]{1,0:T(1,128)}', space=vmem, size = 0x12000, scoped, tag = 'internal scratch']
  %s0 = inlined_call_operand.vmem [shape: f32[2], index: 0, kind: input, shape index: {}]
  %s1 = inlined_call_operand.vmem [shape: f32[8,128], index: 1, kind: input, shape index: {}]
  %s2 = inlined_call_operand.vmem [shape: f32[8,128], index: 2, kind: output, shape index: {}]
  %s3 = sld [smem:[#allocation0]]
  $region22: #{_lcf_sample.1} parent=0
    _
  %s5 = ssub.s32 1, %s3
  %s6 = scalar_select 0, %s5, %s3
  $region1: #{_lcf_sample.1} parent=0
    #allocation2 [shape = 'u8[512]{0}', space=smem, size = 0x200, scoped, tag = 'input window, operand 0, single buffered']
    #allocation3 [shape = 's32[1]{0}', space=sflag, size = 0x4, scoped, tag = 'scoped memory for _lcf_sample.1']
    %7 = vsyncpa [#allocation3], 0
    // Predicated region
    $region2: #{_lcf_sample.1} parent=1 // pred_check
      _
    $region3: #{_lcf_sample.1} parent=1 // pred_check_branch
      %9 = sbr.rel (0) target = $region5
    $region4: #{_lcf_sample.1} parent=1 // pred_region
      %s11 = ssub.s32 16, 16
      %12 = vsyncadd [#allocation3], %s11
      %s14 = sshll.u32 %s0, 4
      %s15 = int_to_ptr.vmem [resolvable:$true] %s14
      %17 = dma.vmem_to_smem %s15, 16, [#allocation2], [#allocation3]
    $region5: #{_lcf_sample.1} parent=1 // pred_fallthru
      _
    // Predicated region
    $region6: #{_lcf_sample.1} parent=1 // pred_check
      _
    $region7: #{_lcf_sample.1} parent=1 // pred_check_branch
      %19 = sbr.rel (0) target = $region9
    $region8: #{_lcf_sample.1} parent=1 // pred_region
      _
    $region9: #{_lcf_sample.1} parent=1 // pred_fallthru
      _
    // Predicated region
    $region10: #{_lcf_sample.1} parent=1 // pred_check
      _
    $region11: #{_lcf_sample.1} parent=1 // pred_check_branch
      %21 = sbr.rel (0) target = $region13
    $region12: #{_lcf_sample.1} parent=1 // pred_region
      %22 = dma.done [#allocation3], 16
    $region13: #{_lcf_sample.1} parent=1 // pred_fallthru
      _
    %23 = sfence
    %s24 = sld [smem:[#allocation2]]
    %s25 = sld [smem:[#allocation2 + $0x1]]
    %v26 = vld [vmem:[%s1] sm:$0xff]
    %v27 = vstv %s25
    %v28 = vmul.f32 %v27, %v26
    %v29 = vstv %s24
    %v30 = vadd.f32 %v29, %v28
    %31 = vst [vmem:[%s2] sm:$0xff] %v30
    // Predicated region
    $region14: #{_lcf_sample.1} parent=1 // pred_check
      _
    $region15: #{_lcf_sample.1} parent=1 // pred_check_branch
      %33 = sbr.rel (0) target = $region17
    $region16: #{_lcf_sample.1} parent=1 // pred_region
      _
    $region17: #{_lcf_sample.1} parent=1 // pred_fallthru
      _
    // Predicated region
    $region18: #{_lcf_sample.1} parent=1 // pred_check
      _
    $region19: #{_lcf_sample.1} parent=1 // pred_check_branch
      %35 = sbr.rel (0) target = $region21
    $region20: #{_lcf_sample.1} parent=1 // pred_region
      _
    $region21: #{_lcf_sample.1} parent=1 // pred_fallthru
      _
    %36 = vsyncpa [#allocation3], 1

</llo_original>
